<compile_context>
chip_gen: v7x
topology: tpu7x:2x2x1
jax: 0.10.0
libtpu: 0.0.40
codegen_flags: <defaults>
</compile_context>

<pallas_src>
import functools
import math

import jax
import jax.numpy as jnp
from jax.experimental import pallas as pl
from jax.experimental.pallas import tpu as pltpu


def _round_up(x: int, m: int) -> int:
    return (x + m - 1) // m * m


# --------------------------------------------------------------------------
# Small-vocab path: table resident in VMEM, gather = one-hot matmul on MXU.
# --------------------------------------------------------------------------
def _resident_table_kernel(tok_ref, table_ref, out_ref, *, scale, vocab):
    # tok_ref:   VMEM int32 (TOK_TILE, 1)   token ids for this tile
    # table_ref: VMEM       (vocab, emb)    full embedding table (resident)
    # out_ref:   VMEM       (TOK_TILE, emb)
    ids = tok_ref[...]                                        # (T, 1) int32
    tok_tile = ids.shape[0]
    col = jax.lax.broadcasted_iota(jnp.int32, (tok_tile, vocab), 1)
    onehot = (col == ids).astype(table_ref.dtype)             # (T, vocab)
    rows = jnp.dot(onehot, table_ref[...],
                   preferred_element_type=jnp.float32)        # (T, emb) f32
    out_ref[...] = (rows * scale).astype(out_ref.dtype)


# --------------------------------------------------------------------------
# Large-vocab path: manual double-buffered per-row DMA gather from HBM (P4).
# --------------------------------------------------------------------------
def _dma_gather_kernel(tok_ref, emb_hbm, out_ref, buf, sem, *, scale, tok_tile):
    # tok_ref: SMEM int32 (n_pad,)  scalar-prefetched token ids
    # emb_hbm: HBM ref (vocab, emb) (memory_space=pl.ANY)
    # buf:     VMEM (2, TOK_TILE, emb) double buffer
    # sem:     DMA semaphores (2,) -- one per buffer slot (byte-counted)
    t = pl.program_id(0)
    n_tiles = pl.num_programs(0)
    slot = t % 2

    def issue_tile(tile_idx, dst_slot):
        base = tile_idx * tok_tile

        @pl.loop(0, tok_tile)
        def _(j):
            row = tok_ref[base + j]                           # clamped in wrapper
            pltpu.make_async_copy(
                emb_hbm.at[pl.ds(row, 1)],                    # (1, emb) HBM row
                buf.at[dst_slot, pl.ds(j, 1)],                # (1, emb) VMEM slot
                sem.at[dst_slot],
            ).start()

    # Prime the pipeline on the first step.
    @pl.when(t == 0)
    def _():
        issue_tile(0, 0)

    # Prefetch next tile into the other slot before consuming this one.
    @pl.when(t + 1 < n_tiles)
    def _():
        issue_tile(t + 1, 1 - slot)

    # Drain this tile's row copies (each signalled sem[slot] by emb*itemsize bytes).
    @pl.loop(0, tok_tile)
    def _(j):
        pltpu.make_async_copy(
            emb_hbm.at[pl.ds(0, 1)], buf.at[slot, pl.ds(j, 1)], sem.at[slot]
        ).wait()

    out_ref[...] = (buf[slot].astype(jnp.float32) * scale).astype(out_ref.dtype)


# --------------------------------------------------------------------------
# Wrapper
# --------------------------------------------------------------------------
def token_embedding(tokens: jax.Array, emb_table: jax.Array, *,
                    tok_tile: int | None = None) -> jax.Array:
    """Pallas equivalent of nn.Embedding(vocab, emb)(tokens) * sqrt(emb)."""
    batch, seq = tokens.shape
    vocab, emb = emb_table.shape
    n = batch * seq
    scale = math.sqrt(float(emb))
    itemsize = jnp.dtype(emb_table.dtype).itemsize

    # Clamp ids: they directly drive gather addressing (OOB DMA is undefined).
    tok_flat = jnp.clip(tokens.reshape(n).astype(jnp.int32), 0, vocab - 1)

    # Token tile: multiple of 8 (full f32 sublanes), capped by a conservative
    # VMEM budget so double-buffered gather + output tiles fit v7x's 64 MiB VMEM.
    if tok_tile is None:
        budget = 8 * 1024 * 1024
        max_tile = max(8, (budget // max(1, 4 * emb * itemsize)) // 8 * 8)
        tok_tile = min(512, max_tile, _round_up(n, 8))
    n_pad = _round_up(n, tok_tile)
    if n_pad != n:
        tok_flat = jnp.pad(tok_flat, (0, n_pad - n))  # pad ids = 0 (valid row)
    n_tiles = n_pad // tok_tile

    table_bytes = vocab * emb * itemsize
    use_resident = (table_bytes <= 4 * 1024 * 1024) and (vocab <= 4096)

    if use_resident:
        out_flat = pl.pallas_call(
            functools.partial(_resident_table_kernel, scale=scale, vocab=vocab),
            out_shape=jax.ShapeDtypeStruct((n_pad, emb), emb_table.dtype),
            grid_spec=pltpu.PrefetchScalarGridSpec(
                num_scalar_prefetch=0,
                grid=(n_tiles,),
                in_specs=[
                    # token ids, (TOK_TILE, 1) tile per step
                    pl.BlockSpec((tok_tile, 1), lambda i: (i, 0)),
                    # full table, constant block index -> stays resident in VMEM
                    pl.BlockSpec((vocab, emb), lambda i: (0, 0)),
                ],
                out_specs=pl.BlockSpec((tok_tile, emb), lambda i: (i, 0)),
            ),
            compiler_params=pltpu.CompilerParams(
                dimension_semantics=("parallel",),
                vmem_limit_bytes=32 * 1024 * 1024,
            ),
        )(tok_flat.reshape(n_pad, 1), emb_table)
    else:
        out_flat = pl.pallas_call(
            functools.partial(_dma_gather_kernel, scale=scale, tok_tile=tok_tile),
            out_shape=jax.ShapeDtypeStruct((n_pad, emb), emb_table.dtype),
            grid_spec=pltpu.PrefetchScalarGridSpec(
                num_scalar_prefetch=1,                     # token ids -> SMEM
                grid=(n_tiles,),
                in_specs=[pl.BlockSpec(memory_space=pl.ANY)],  # table stays in HBM
                out_specs=pl.BlockSpec((tok_tile, emb), lambda t, tok: (t, 0)),
                scratch_shapes=[
                    pltpu.VMEM((2, tok_tile, emb), emb_table.dtype),
                    pltpu.SemaphoreType.DMA((2,)),
                ],
            ),
            compiler_params=pltpu.CompilerParams(
                # cross-step prefetch into shared scratch -> keep sequential
                dimension_semantics=("arbitrary",),
                vmem_limit_bytes=32 * 1024 * 1024,
            ),
        )(tok_flat, emb_table)

    return out_flat[:n].reshape(batch, seq, emb)


if __name__ == "__main__":
    # Small shapes consistent with the module: vocab=64, emb_size=32, batch=2, seq=8.
    vocab_size = 64
    emb_size = 32
    batch, seq = 2, 8

    key = jax.random.PRNGKey(0)
    k_emb, k_tok = jax.random.split(key)

    # Deterministic synthetic parameters (nn.Embedding weight ~ N(0, 1)).
    emb_table = jax.random.normal(k_emb, (vocab_size, emb_size), dtype=jnp.float32)
    tokens = jax.random.randint(k_tok, (batch, seq), 0, vocab_size, dtype=jnp.int32)

    out = jax.block_until_ready(token_embedding(tokens, emb_table))

    # Reference check in plain JAX (same semantics as the PyTorch forward).
    ref = jnp.take(emb_table, tokens, axis=0) * math.sqrt(float(emb_size))
    assert out.shape == (batch, seq, emb_size)
    assert jnp.allclose(out, ref, rtol=1e-5, atol=1e-5), "mismatch vs reference"

    print("KERNEL_OK")
</pallas_src>

<mosaic_0001>
module attributes {stable_mosaic.version = 11 : i64} {
  func.func @_resident_table_kernel(%arg0: i32, %arg1: memref<16x1xi32, #tpu.memory_space<vmem>>, %arg2: memref<64x32xf32, #tpu.memory_space<vmem>>, %arg3: memref<16x32xf32, #tpu.memory_space<vmem>>) attributes {dimension_semantics = [#tpu.dimension_semantics<parallel>], iteration_bounds = array<i64: 1>, scalar_prefetch = 0 : i64, scratch_operands = 0 : i64, tpu.core_type = #tpu.core_type<tc>, window_params = [{transform_indices = @transform_0, window_bounds = array<i64: 16, 1>}, {pipeline_mode = #tpu.pipeline_mode<synchronous>, transform_indices = @transform_1, window_bounds = array<i64: 64, 32>}, {transform_indices = @transform_2, window_bounds = array<i64: 16, 32>}]} {
    %c0 = arith.constant 0 : index
    %c0_0 = arith.constant 0 : index
    %0 = vector.load %arg1[%c0, %c0_0] : memref<16x1xi32, #tpu.memory_space<vmem>>, vector<16x1xi32>
    %1 = tpu.iota {dimensions = array<i32: 1>} : vector<16x64xi32>
    %2 = vector.broadcast %0 : vector<16x1xi32> to vector<16x64xi32>
    %3 = arith.cmpi eq, %1, %2 : vector<16x64xi32>
    %4 = arith.extui %3 : vector<16x64xi1> to vector<16x64xi32>
    %5 = arith.sitofp %4 : vector<16x64xi32> to vector<16x64xf32>
    %c0_1 = arith.constant 0 : index
    %c0_2 = arith.constant 0 : index
    %6 = vector.load %arg2[%c0_1, %c0_2] : memref<64x32xf32, #tpu.memory_space<vmem>>, vector<64x32xf32>
    %cst = arith.constant dense<0.000000e+00> : vector<16x32xf32>
    %7 = tpu.matmul %5, %6, %cst {dimension_numbers = #tpu.dot_dimension_numbers<[1], [0], [0], [1], [0, 0, 1, 1], [], []>} : vector<16x64xf32>, vector<64x32xf32>, vector<16x32xf32> -> vector<16x32xf32>
    %cst_3 = arith.constant 5.65685415 : f32
    %8 = vector.broadcast %cst_3 : f32 to vector<16x32xf32>
    %9 = arith.mulf %7, %8 : vector<16x32xf32>
    %c0_4 = arith.constant 0 : index
    %c0_5 = arith.constant 0 : index
    %10 = vector.load %arg3[%c0_4, %c0_5] : memref<16x32xf32, #tpu.memory_space<vmem>>, vector<16x32xf32>
    tpu.vector_store %arg3[%c0_4, %c0_5], %9 {strides = array<i32>} : memref<16x32xf32, #tpu.memory_space<vmem>>, vector<16x32xf32>,
    return
  }
  func.func @transform_0(%arg0: i32) -> (i32, i32) {
    %c0_i32 = arith.constant 0 : i32
    %c0_i32_0 = arith.constant 0 : i32
    return %arg0, %c0_i32 : i32, i32
  }
  func.func @transform_1(%arg0: i32) -> (i32, i32) {
    %c0_i32 = arith.constant 0 : i32
    %c0_i32_0 = arith.constant 0 : i32
    %c0_i32_1 = arith.constant 0 : i32
    return %c0_i32, %c0_i32_0 : i32, i32
  }
  func.func @transform_2(%arg0: i32) -> (i32, i32) {
    %c0_i32 = arith.constant 0 : i32
    %c0_i32_0 = arith.constant 0 : i32
    return %arg0, %c0_i32 : i32, i32
  }
}

</mosaic_0001>

<llo_original>
// kernel: tpu_custom_call.1
$region0: #{tpu_custom_call.1}
  #allocation0 [shape = 'u32[]', space=smem, size = 0x4, offset = 0x4, fixed_abs, tag = 'smem constant byte address 0x4 - core index']
  #allocation1 [shape = 'u32[144,128]{1,0:T(1,128)}', space=vmem, size = 0x12000, scoped, tag = 'internal scratch']
  %s0 = inlined_call_operand.vmem [shape: s32[16,1], index: 0, kind: input, shape index: {}]
  %s1 = inlined_call_operand.vmem [shape: f32[64,32], index: 1, kind: input, shape index: {}]
  %s2 = inlined_call_operand.hbm [shape: f32[16,32], index: 2, kind: output, shape index: {}]
  %s3 = sld [smem:[#allocation0]]
  $region18: #{tpu_custom_call.1} parent=0
    _
  %s5 = ssub.s32 1, %s3
  %s6 = scalar_select 0, %s5, %s3
  $region1: #{tpu_custom_call.1} parent=0
    #allocation2 [shape = 'u8[8192]{0}', space=vmem, size = 0x2000, scoped, tag = 'output window, operand 0, single buffered']
    #allocation3 [shape = 's32[1]{0}', space=sflag, size = 0x4, scoped, tag = 'scoped memory for tpu_custom_call.1']
    %7 = vsyncpa [#allocation3], 0
    // Predicated region
    $region2: #{tpu_custom_call.1} parent=1 // pred_check
      _
    $region3: #{tpu_custom_call.1} parent=1 // pred_check_branch
      %9 = sbr.rel (0) target = $region5
    $region4: #{tpu_custom_call.1} parent=1 // pred_region
      _
    $region5: #{tpu_custom_call.1} parent=1 // pred_fallthru
      _
    // Predicated region
    $region6: #{tpu_custom_call.1} parent=1 // pred_check
      _
    $region7: #{tpu_custom_call.1} parent=1 // pred_check_branch
      %11 = sbr.rel (0) target = $region9
    $region8: #{tpu_custom_call.1} parent=1 // pred_region
      _
    $region9: #{tpu_custom_call.1} parent=1 // pred_fallthru
      _
    %v12 = vld [vmem:[%s0] sm:$0xff]
    %v13 = vld [vmem:[%s0 + $0x8] sm:$0xff]
    %v14 = vlaneseq
    %v15 = vand.u32 %v14, 127
    %16 = vset.pattern.permute.xlu0 0
    %17 = vperm.xlu0 %16, %v12
    %v18 = vpop.permute.xlu0 %17
    %19 = vset.pattern.permute.xlu0 0
    %20 = vperm.xlu0 %19, %v13
    %v21 = vpop.permute.xlu0 %20
    %vm22 = vcmp.eq.s32.totalorder %v15, %v18
    %vm23 = vcmp.eq.s32.totalorder %v15, %v21
    %v24 = vsel %vm22, 1, 0
    %v25 = vsel %vm23, 1, 0
    %v26 = vcvt.s32.f32 %v24
    %v27 = vcvt.s32.f32 %v25
    %v28 = vld [vmem:[%s1] sm:$0xff]
    %v29 = vld [vmem:[%s1 + $0x8] sm:$0xff]
    %v30 = vld [vmem:[%s1 + $0x10] sm:$0xff]
    %v31 = vld [vmem:[%s1 + $0x18] sm:$0xff]
    %v32 = vld [vmem:[%s1 + $0x20] sm:$0xff]
    %v33 = vld [vmem:[%s1 + $0x28] sm:$0xff]
    %v34 = vld [vmem:[%s1 + $0x30] sm:$0xff]
    %v35 = vld [vmem:[%s1 + $0x38] sm:$0xff]
    %vm36 = vcmask 523264
    %v38 = vsel %vm36, %v26, 0
    %v41 = vsel %vm36, %v27, 0
    %43 = vmatprep.subr.mxu0 0.0
    %44 = vmatpush1.msra.mxu0 %v28
    %45 = vmatprep.subr.mxu0 0.0
    %46 = vmatpush1.msra.mxu0 %v29
    %47 = vmatprep.subr.mxu0 0.0
    %48 = vmatpush1.msra.mxu0 %v30
    %49 = vmatprep.subr.mxu0 0.0
    %50 = vmatpush1.msra.mxu0 %v31
    %51 = vmatprep.subr.mxu0 0.0
    %52 = vmatpush1.msra.mxu0 %v32
    %53 = vmatprep.subr.mxu0 0.0
    %54 = vmatpush1.msra.mxu0 %v33
    %55 = vmatprep.subr.mxu0 0.0
    %56 = vmatpush1.msra.mxu0 %v34
    %57 = vmatprep.subr.mxu0 0.0
    %58 = vmatpush1.msra.mxu0 %v35
    %59 = vmatprep.subr.mxu0 0.0
    %60 = vmatpush1.msra.mxu0 0.0
    %61 = vmatprep.subr.mxu0 0.0
    %62 = vmatpush1.msra.mxu0 0.0
    %63 = vmatprep.subr.mxu0 0.0
    %64 = vmatpush1.msra.mxu0 0.0
    %65 = vmatprep.subr.mxu0 0.0
    %66 = vmatpush1.msra.mxu0 0.0
    %67 = vmatprep.subr.mxu0 0.0
    %68 = vmatpush1.msra.mxu0 0.0
    %69 = vmatprep.subr.mxu0 0.0
    %70 = vmatpush1.msra.mxu0 0.0
    %71 = vmatprep.subr.mxu0 0.0
    %72 = vmatpush1.msra.mxu0 0.0
    %73 = vmatprep.subr.mxu0 0.0
    %74 = vmatpush1.msra.mxu0 0.0
    %75 = vmatprep.subr.mxu0 0.0
    %76 = vmatpush1.msra.mxu0 0.0
    %77 = vmatprep.subr.mxu0 0.0
    %78 = vmatpush1.msra.mxu0 0.0
    %79 = vmatprep.subr.mxu0 0.0
    %80 = vmatpush1.msra.mxu0 0.0
    %81 = vmatprep.subr.mxu0 0.0
    %82 = vmatpush1.msra.mxu0 0.0
    %83 = vmatprep.subr.mxu0 0.0
    %84 = vmatpush1.msra.mxu0 0.0
    %85 = vmatprep.subr.mxu0 0.0
    %86 = vmatpush1.msra.mxu0 0.0
    %87 = vmatprep.subr.mxu0 0.0
    %88 = vmatpush1.msra.mxu0 0.0
    %89 = vmatprep.subr.mxu0 0.0
    %90 = vmatpush1.msra.mxu0 0.0
    %91 = vmatprep.subr.mxu0 0.0
    %92 = vmatpush1.msra.mxu0 0.0
    %93 = vmatprep.subr.mxu0 0.0
    %94 = vmatpush1.msra.mxu0 0.0
    %95 = vmatprep.subr.mxu0 0.0
    %96 = vmatpush1.msra.mxu0 0.0
    %97 = vmatprep.subr.mxu0 0.0
    %98 = vmatpush1.msra.mxu0 0.0
    %99 = vmatprep.subr.mxu0 0.0
    %100 = vmatpush1.msra.mxu0 0.0
    %101 = vmatprep.subr.mxu0 0.0
    %102 = vmatpush1.msra.mxu0 0.0
    %103 = vmatprep.subr.mxu0 0.0
    %104 = vmatpush1.msra.mxu0 0.0
    %105 = vmatprep.subr.mxu0 0.0
    %106 = vmatpush1.msra.mxu0 0.0
    %107 = vmatprep.mubr.f32.mxu0 0.0
    %108 = vmatmul.mubr.f32.gmra.mrb[0].mxu0 %v38
    %v109 = vpop.f32.mrb[0].mxu0
    %v110 = vadd.f32 0.0, %v109
    %v111 = vpop.f32.mrb[0].mxu0
    %112 = vmatprep.mubr.f32.mxu0 0.0
    %113 = vmatmul.mubr.f32.gmra.mrb[0].mxu0 %v41
    %v114 = vpop.f32.mrb[0].mxu0
    %v115 = vadd.f32 0.0, %v114
    %v116 = vpop.f32.mrb[0].mxu0
    %117 = vdwg.mxu0
    %v118 = vmul.f32 %v110, 5.656854
    %v119 = vmul.f32 %v115, 5.656854
    %vm120 = vcmask 261120
    %121 = vst.msk [vmem:[#allocation2] sm:$0xff] %vm120, %v118
    %122 = vst.msk [vmem:[#allocation2 + $0x8] sm:$0xff] %vm120, %v119
    // Predicated region
    $region10: #{tpu_custom_call.1} parent=1 // pred_check
      _
    $region11: #{tpu_custom_call.1} parent=1 // pred_check_branch
      %124 = sbr.rel (0) target = $region13
    $region12: #{tpu_custom_call.1} parent=1 // pred_region
      %s126 = ssub.s32 256, 256
      %127 = vsyncadd [#allocation3], %s126
      %s128 = sshll.u32 [#allocation2], 4
      %s129 = int_to_ptr.vmem [resolvable:$true] %s128
      %134 = dma.vmem_to_hbm [thread:$0]  %s129, 256, %s2, [#allocation3], 128, 128, 8
    $region13: #{tpu_custom_call.1} parent=1 // pred_fallthru
      _
    // Predicated region
    $region14: #{tpu_custom_call.1} parent=1 // pred_check
      _
    $region15: #{tpu_custom_call.1} parent=1 // pred_check_branch
      %136 = sbr.rel (0) target = $region17
    $region16: #{tpu_custom_call.1} parent=1 // pred_region
      %137 = dma.done [#allocation3], 256
    $region17: #{tpu_custom_call.1} parent=1 // pred_fallthru
      _
    %138 = vsyncpa [#allocation3], 1

</llo_original>
